<compile_context>
chip_gen: v6e
topology: v6e:2x2x1
jax: 0.10.0
libtpu: 0.0.40
codegen_flags: <defaults>
</compile_context>

<pallas_src>
import jax
import jax.numpy as jnp
from jax import lax
from jax.experimental import pallas as pl
from jax.experimental.pallas import tpu as pltpu

HIDDEN = 8
OUT = 1
_LANES = 128


def _predict_kernel(x_ref, w1_ref, b1_ref, w2_ref, b2_ref, o_ref):
    # x_ref: (TB, D), w1_ref: (8, D), b1_ref: (8, 1), w2_ref: (8, 1), b2_ref: (1, 1)
    x = x_ref[...]
    w1 = w1_ref[...]
    # First linear on the MXU, contracting D of both operands ("NT" form, as in
    # flash-attention QK^T). Result (8, TB): batch on the lane axis -> lane-dense.
    h = lax.dot_general(
        w1, x, (((1,), (1,)), ((), ())), preferred_element_type=jnp.float32
    )
    # Bias + ReLU in f32 on the VPU. Dropout(p=0) is identity -> no-op.
    h = jnp.maximum(h + b1_ref[...], 0.0)
    # Second linear (8 -> 1) as multiply + sublane reduce (VPU/XLU), not the MXU.
    o = jnp.sum(h * w2_ref[...], axis=0, keepdims=True) + b2_ref[...]  # (1, TB)
    o_ref[...] = o.astype(o_ref.dtype)


def _default_tile_b(B, D, itemsize):
    # ~4 MiB of x per in-flight tile; double-buffered -> ~8 MiB, which fits
    # v5e's 16 MiB default scoped VMEM and leaves ample headroom on v6e/v7x.
    rows = (4 << 20) // max(1, D * itemsize)
    rows = max(_LANES, (rows // _LANES) * _LANES)
    b_ceil = -(-B // _LANES) * _LANES  # never exceed the (padded) batch
    return int(min(rows, b_ceil))


def predict_layer(x, w1, b1, w2, b2, *, tile_b=None):
    """x: (B, D). w1: (8, D), b1: (8, 1), w2: (8, 1), b2: (1, 1). Returns (B, 1)."""
    B, D = x.shape
    assert w1.shape == (HIDDEN, D)
    assert b1.shape == (HIDDEN, 1)
    assert w2.shape == (HIDDEN, OUT)
    assert b2.shape == (1, OUT)

    itemsize = jnp.dtype(x.dtype).itemsize
    if tile_b is None:
        tile_b = _default_tile_b(B, D, itemsize)
    assert tile_b % _LANES == 0, "tile_b must be a multiple of 128 (lane-dense output)"

    # Pad the batch so it divides evenly into tiles; padded rows are discarded.
    B_pad = -(-B // tile_b) * tile_b
    if B_pad != B:
        x = jnp.pad(x, ((0, B_pad - B), (0, 0)))
    grid = (B_pad // tile_b,)

    out = pl.pallas_call(
        _predict_kernel,
        out_shape=jax.ShapeDtypeStruct((1, B_pad), x.dtype),
        grid_spec=pltpu.PrefetchScalarGridSpec(
            num_scalar_prefetch=0,
            grid=grid,
            in_specs=[
                pl.BlockSpec((tile_b, D), lambda i: (i, 0)),     # x tile (streamed)
                pl.BlockSpec((HIDDEN, D), lambda i: (0, 0)),     # W1 (resident)
                pl.BlockSpec((HIDDEN, 1), lambda i: (0, 0)),     # b1 (resident)
                pl.BlockSpec((HIDDEN, OUT), lambda i: (0, 0)),   # W2 (resident)
                pl.BlockSpec((1, OUT), lambda i: (0, 0)),        # b2 (resident)
            ],
            # Lane-dense output block: (1, tile_b) slab per grid step.
            out_specs=pl.BlockSpec((1, tile_b), lambda i: (0, i)),
        ),
        compiler_params=pltpu.CompilerParams(
            dimension_semantics=("parallel",),
        ),
    )(x, w1, b1, w2, b2)

    # (1, B_pad) -> (B, 1); drop padded rows.
    return out.reshape(B_pad, 1)[:B]
    # TODO(synk): for large deployments, feed x/w1 as bfloat16 (keep the f32
    # accumulate in-kernel) to halve HBM traffic; kept f32 here for exactness.


def init_params(key, embedding_dim):
    """Deterministic synthetic parameters matching nn.Linear init ranges.
    Shapes: w1 (8, D) [PyTorch (out, in) layout], b1 (8, 1), w2 (8, 1), b2 (1, 1)."""
    k1, k2, k3, k4 = jax.random.split(key, 4)
    lim1 = 1.0 / jnp.sqrt(float(embedding_dim))
    lim2 = 1.0 / jnp.sqrt(float(HIDDEN))
    w1 = jax.random.uniform(k1, (HIDDEN, embedding_dim), jnp.float32, -lim1, lim1)
    b1 = jax.random.uniform(k2, (HIDDEN, 1), jnp.float32, -lim1, lim1)
    w2 = jax.random.uniform(k3, (HIDDEN, OUT), jnp.float32, -lim2, lim2)
    b2 = jax.random.uniform(k4, (1, OUT), jnp.float32, -lim2, lim2)
    return w1, b1, w2, b2


if __name__ == "__main__":
    key = jax.random.PRNGKey(0)
    k_x, k_p = jax.random.split(key)

    B, D = 256, 32  # small shapes consistent with PredictLayer(embedding_dim=32)
    x = jax.random.normal(k_x, (B, D), dtype=jnp.float32)
    w1, b1, w2, b2 = init_params(k_p, D)

    # Multi-step grid (tile_b=128 -> grid=(2,)): exercises pipelining + megacore.
    out = predict_layer(x, w1, b1, w2, b2, tile_b=128)
    out = jax.block_until_ready(out)

    # Reference check (plain JAX) to verify forward semantics.
    ref = jnp.maximum(x @ w1.T + b1.T, 0.0) @ w2 + b2
    assert out.shape == (B, OUT)
    assert jnp.allclose(out, ref, atol=1e-5, rtol=1e-5)

    # Default tile selection + ragged-batch padding path.
    out2 = jax.block_until_ready(predict_layer(x[:200], w1, b1, w2, b2))
    assert out2.shape == (200, OUT)
    assert jnp.allclose(out2, ref[:200], atol=1e-5, rtol=1e-5)

    print("KERNEL_OK")
</pallas_src>

<mosaic_0001>
module attributes {stable_mosaic.version = 11 : i64} {
  func.func @_predict_kernel(%arg0: i32, %arg1: memref<128x32xf32, #tpu.memory_space<vmem>>, %arg2: memref<8x32xf32, #tpu.memory_space<vmem>>, %arg3: memref<8x1xf32, #tpu.memory_space<vmem>>, %arg4: memref<8x1xf32, #tpu.memory_space<vmem>>, %arg5: memref<1x1xf32, #tpu.memory_space<vmem>>, %arg6: memref<1x128xf32, #tpu.memory_space<vmem>>) attributes {dimension_semantics = [#tpu.dimension_semantics<parallel>], iteration_bounds = array<i64: 2>, scalar_prefetch = 0 : i64, scratch_operands = 0 : i64, tpu.core_type = #tpu.core_type<tc>, window_params = [{transform_indices = @transform_0, window_bounds = array<i64: 128, 32>}, {pipeline_mode = #tpu.pipeline_mode<synchronous>, transform_indices = @transform_1, window_bounds = array<i64: 8, 32>}, {pipeline_mode = #tpu.pipeline_mode<synchronous>, transform_indices = @transform_2, window_bounds = array<i64: 8, 1>}, {pipeline_mode = #tpu.pipeline_mode<synchronous>, transform_indices = @transform_3, window_bounds = array<i64: 8, 1>}, {pipeline_mode = #tpu.pipeline_mode<synchronous>, transform_indices = @transform_4, window_bounds = array<i64: 1, 1>}, {transform_indices = @transform_5, window_bounds = array<i64: 1, 128>}]} {
    %c0 = arith.constant 0 : index
    %c0_0 = arith.constant 0 : index
    %0 = vector.load %arg1[%c0, %c0_0] : memref<128x32xf32, #tpu.memory_space<vmem>>, vector<128x32xf32>
    %c0_1 = arith.constant 0 : index
    %c0_2 = arith.constant 0 : index
    %1 = vector.load %arg2[%c0_1, %c0_2] : memref<8x32xf32, #tpu.memory_space<vmem>>, vector<8x32xf32>
    %cst = arith.constant dense<0.000000e+00> : vector<8x128xf32>
    %2 = tpu.matmul %1, %0, %cst {dimension_numbers = #tpu.dot_dimension_numbers<[1], [1], [0], [0], [0, 0, 1, 0], [], []>} : vector<8x32xf32>, vector<128x32xf32>, vector<8x128xf32> -> vector<8x128xf32>
    %c0_3 = arith.constant 0 : index
    %c0_4 = arith.constant 0 : index
    %3 = vector.load %arg3[%c0_3, %c0_4] : memref<8x1xf32, #tpu.memory_space<vmem>>, vector<8x1xf32>
    %4 = vector.broadcast %3 : vector<8x1xf32> to vector<8x128xf32>
    %5 = arith.addf %2, %4 : vector<8x128xf32>
    %cst_5 = arith.constant 0.000000e+00 : f32
    %6 = vector.broadcast %cst_5 : f32 to vector<8x128xf32>
    %7 = arith.maximumf %5, %6 : vector<8x128xf32>
    %c0_6 = arith.constant 0 : index
    %c0_7 = arith.constant 0 : index
    %8 = vector.load %arg4[%c0_6, %c0_7] : memref<8x1xf32, #tpu.memory_space<vmem>>, vector<8x1xf32>
    %9 = vector.broadcast %8 : vector<8x1xf32> to vector<8x128xf32>
    %10 = arith.mulf %7, %9 : vector<8x128xf32>
    %cst_8 = arith.constant dense<0.000000e+00> : vector<128xf32>
    %11 = vector.multi_reduction <add>, %10, %cst_8 [0] : vector<8x128xf32> to vector<128xf32>
    %12 = vector.shape_cast %11 : vector<128xf32> to vector<1x128xf32>
    %c0_9 = arith.constant 0 : index
    %c0_10 = arith.constant 0 : index
    %13 = vector.load %arg5[%c0_9, %c0_10] : memref<1x1xf32, #tpu.memory_space<vmem>>, vector<1x1xf32>
    %14 = vector.broadcast %13 : vector<1x1xf32> to vector<1x128xf32>
    %15 = arith.addf %12, %14 : vector<1x128xf32>
    %c0_11 = arith.constant 0 : index
    %c0_12 = arith.constant 0 : index
    %16 = vector.load %arg6[%c0_11, %c0_12] : memref<1x128xf32, #tpu.memory_space<vmem>>, vector<1x128xf32>
    tpu.vector_store %arg6[%c0_11, %c0_12], %15 {strides = array<i32>} : memref<1x128xf32, #tpu.memory_space<vmem>>, vector<1x128xf32>,
    return
  }
  func.func @transform_0(%arg0: i32) -> (i32, i32) {
    %c0_i32 = arith.constant 0 : i32
    %c0_i32_0 = arith.constant 0 : i32
    return %arg0, %c0_i32 : i32, i32
  }
  func.func @transform_1(%arg0: i32) -> (i32, i32) {
    %c0_i32 = arith.constant 0 : i32
    %c0_i32_0 = arith.constant 0 : i32
    %c0_i32_1 = arith.constant 0 : i32
    return %c0_i32, %c0_i32_0 : i32, i32
  }
  func.func @transform_2(%arg0: i32) -> (i32, i32) {
    %c0_i32 = arith.constant 0 : i32
    %c0_i32_0 = arith.constant 0 : i32
    %c0_i32_1 = arith.constant 0 : i32
    return %c0_i32, %c0_i32_0 : i32, i32
  }
  func.func @transform_3(%arg0: i32) -> (i32, i32) {
    %c0_i32 = arith.constant 0 : i32
    %c0_i32_0 = arith.constant 0 : i32
    %c0_i32_1 = arith.constant 0 : i32
    return %c0_i32, %c0_i32_0 : i32, i32
  }
  func.func @transform_4(%arg0: i32) -> (i32, i32) {
    %c0_i32 = arith.constant 0 : i32
    %c0_i32_0 = arith.constant 0 : i32
    %c0_i32_1 = arith.constant 0 : i32
    return %c0_i32, %c0_i32_0 : i32, i32
  }
  func.func @transform_5(%arg0: i32) -> (i32, i32) {
    %c0_i32 = arith.constant 0 : i32
    %c0_i32_0 = arith.constant 0 : i32
    return %c0_i32, %arg0 : i32, i32
  }
}

</mosaic_0001>

<llo_original>
// kernel: tpu_custom_call.1
$region0: #{tpu_custom_call.1}
  #allocation0 [shape = 'u32[]', space=smem, size = 0x4, offset = 0x4, fixed_abs, tag = 'smem constant byte address 0x4 - core index']
  #allocation1 [shape = 'u32[144,128]{1,0:T(1,128)}', space=vmem, size = 0x12000, scoped, tag = 'internal scratch']
  #allocation2 [shape = 'f32[1,1]{1,0:T(1,128)S(1)}', space=vmem, size = 0x200, scoped, tag = 'scoped memory for tpu_custom_call.1']
  %s0 = inlined_call_operand.vmem [shape: f32[256,32], index: 0, kind: input, shape index: {}]
  %s1 = inlined_call_operand.vmem [shape: f32[8,32], index: 1, kind: input, shape index: {}]
  %s2 = inlined_call_operand.vmem [shape: f32[8,1], index: 2, kind: input, shape index: {}]
  %s3 = inlined_call_operand.vmem [shape: f32[8,1], index: 3, kind: input, shape index: {}]
  %s4 = inlined_call_operand.<no memory space> [shape: f32[1,1], index: 4, kind: input, shape index: {}]
  %s5 = inlined_call_operand.hbm [shape: f32[1,256], index: 5, kind: output, shape index: {}]
  %s6 = sld [smem:[#allocation0]]
  $region53: #{tpu_custom_call.1} parent=0
    _
  %s8 = ssub.s32 1, %s6
  %s9 = scalar_select 0, %s8, %s6
  %v10 = vstv %s4
  %11 = vst [vmem:[#allocation2] sm:$0x1] %v10
  $region1: #{tpu_custom_call.1} parent=0
    #allocation3 [shape = 'u8[1024]{0}', space=vmem, size = 0x400, scoped, tag = 'output window, operand 0']
    #allocation4 [shape = 's32[2]{0}', space=sflag, size = 0x8, scoped, tag = 'scoped memory for tpu_custom_call.1']
    %12 = vsyncpa [#allocation4], 0
    %s13 = scalar_lea.sflag [#allocation4], 1
    %14 = vsyncpa %s13, 0
    loop: start=0, step=1, limit=4
    $region2: #{tpu_custom_call.1} parent=1 // loop_pre_header
      _
    $region3: #{tpu_custom_call.1} parent=1 // loop_header
      %s16 = sphi 0, %s20
      %p17 = scmp.ge.s32.totalorder %s16, 4
      %s26 = sphi 0, %s28
      %s29 = sphi 0, %s26
      %s30 = sphi 0, %s29
      %s46 = sphi 0, %s30
      %s50 = sphi 0, %s50
      %s52 = sphi 0, %s50
      %s53 = sphi 0, %s52
      %s67 = sphi 0, %s53
      %s71 = sphi 0, %s71
      %s73 = sphi 0, %s71
      %s74 = sphi 0, %s73
      %s88 = sphi 0, %s74
      %s92 = sphi 0, %s92
      %s94 = sphi 0, %s92
      %s95 = sphi 0, %s94
      %s109 = sphi 0, %s95
      %s113 = sphi 0, %s113
      %s115 = sphi 0, %s113
      %s116 = sphi 0, %s115
      %s130 = sphi 0, %s116
      %s136 = sphi 0, %s138
      %s139 = sphi 0, %s136
      %s140 = sphi 0, %s139
      %s156 = sphi 0, %s140
    $region4: #{tpu_custom_call.1} parent=1 // loop_header_branch
      %19 = sbr.rel (%p17) target = $region8
    $region5: #{tpu_custom_call.1} parent=1 // loop_body
      %s21 = ssub.s32 %s16, 1
      %s22 = ssub.s32 %s16, 2
      %s23 = sadd.s32 %s16, 1
      %s24 = ssub.s32 %s16, %s23
      %p25 = scmp.eq.s32.totalorder %s24, 0
      %s27 = sadd.s32 %s26, 1
      %s28 = scalar_select %p25, %s26, %s27
      %p31 = pneg %p25
      %p32 = scmp.eq.s32.totalorder %s16, 1
      %p33 = por %p31, %p32
      %p34 = scmp.ne.s32.totalorder %s26, %s29
      %p35 = scmp.eq.s32.totalorder %s16, 0
      %p36 = por %p34, %p35
      %p37 = scmp.ne.s32.totalorder %s26, %s29
      %p38 = scmp.eq.s32.totalorder %s21, 1
      %p39 = por %p37, %p38
      %p40 = scmp.ne.s32.totalorder %s29, %s30
      %p41 = scmp.eq.s32.totalorder %s21, 0
      %p42 = por %p40, %p41
      %p43 = scmp.ne.s32.totalorder %s29, %s30
      %p44 = scmp.eq.s32.totalorder %s22, 1
      %p45 = por %p43, %p44
      %p47 = scmp.ne.s32.totalorder %s30, %s46
      %p48 = scmp.eq.s32.totalorder %s22, 0
      %p49 = por %p47, %p48
      %s51 = sadd.s32 %s50, 1
      %p54 = scmp.eq.s32.totalorder %s16, 1
      %p55 = scmp.ne.s32.totalorder %s50, %s52
      %p56 = scmp.eq.s32.totalorder %s16, 0
      %p57 = por %p55, %p56
      %p58 = scmp.ne.s32.totalorder %s50, %s52
      %p59 = scmp.eq.s32.totalorder %s21, 1
      %p60 = por %p58, %p59
      %p61 = scmp.ne.s32.totalorder %s52, %s53
      %p62 = scmp.eq.s32.totalorder %s21, 0
      %p63 = por %p61, %p62
      %p64 = scmp.ne.s32.totalorder %s52, %s53
      %p65 = scmp.eq.s32.totalorder %s22, 1
      %p66 = por %p64, %p65
      %p68 = scmp.ne.s32.totalorder %s53, %s67
      %p69 = scmp.eq.s32.totalorder %s22, 0
      %p70 = por %p68, %p69
      %s72 = sadd.s32 %s71, 1
      %p75 = scmp.eq.s32.totalorder %s16, 1
      %p76 = scmp.ne.s32.totalorder %s71, %s73
      %p77 = scmp.eq.s32.totalorder %s16, 0
      %p78 = por %p76, %p77
      %p79 = scmp.ne.s32.totalorder %s71, %s73
      %p80 = scmp.eq.s32.totalorder %s21, 1
      %p81 = por %p79, %p80
      %p82 = scmp.ne.s32.totalorder %s73, %s74
      %p83 = scmp.eq.s32.totalorder %s21, 0
      %p84 = por %p82, %p83
      %p85 = scmp.ne.s32.totalorder %s73, %s74
      %p86 = scmp.eq.s32.totalorder %s22, 1
      %p87 = por %p85, %p86
      %p89 = scmp.ne.s32.totalorder %s74, %s88
      %p90 = scmp.eq.s32.totalorder %s22, 0
      %p91 = por %p89, %p90
      %s93 = sadd.s32 %s92, 1
      %p96 = scmp.eq.s32.totalorder %s16, 1
      %p97 = scmp.ne.s32.totalorder %s92, %s94
      %p98 = scmp.eq.s32.totalorder %s16, 0
      %p99 = por %p97, %p98
      %p100 = scmp.ne.s32.totalorder %s92, %s94
      %p101 = scmp.eq.s32.totalorder %s21, 1
      %p102 = por %p100, %p101
      %p103 = scmp.ne.s32.totalorder %s94, %s95
      %p104 = scmp.eq.s32.totalorder %s21, 0
      %p105 = por %p103, %p104
      %p106 = scmp.ne.s32.totalorder %s94, %s95
      %p107 = scmp.eq.s32.totalorder %s22, 1
      %p108 = por %p106, %p107
      %p110 = scmp.ne.s32.totalorder %s95, %s109
      %p111 = scmp.eq.s32.totalorder %s22, 0
      %p112 = por %p110, %p111
      %s114 = sadd.s32 %s113, 1
      %p117 = scmp.eq.s32.totalorder %s16, 1
      %p118 = scmp.ne.s32.totalorder %s113, %s115
      %p119 = scmp.eq.s32.totalorder %s16, 0
      %p120 = por %p118, %p119
      %p121 = scmp.ne.s32.totalorder %s113, %s115
      %p122 = scmp.eq.s32.totalorder %s21, 1
      %p123 = por %p121, %p122
      %p124 = scmp.ne.s32.totalorder %s115, %s116
      %p125 = scmp.eq.s32.totalorder %s21, 0
      %p126 = por %p124, %p125
      %p127 = scmp.ne.s32.totalorder %s115, %s116
      %p128 = scmp.eq.s32.totalorder %s22, 1
      %p129 = por %p127, %p128
      %p131 = scmp.ne.s32.totalorder %s116, %s130
      %p132 = scmp.eq.s32.totalorder %s22, 0
      %p133 = por %p131, %p132
      %s134 = ssub.s32 %s16, %s23
      %p135 = scmp.eq.s32.totalorder %s134, 0
      %s137 = sadd.s32 %s136, 1
      %s138 = scalar_select %p135, %s136, %s137
      %p141 = pneg %p135
      %p142 = scmp.eq.s32.totalorder %s16, 1
      %p143 = por %p141, %p142
      %p144 = scmp.ne.s32.totalorder %s136, %s139
      %p145 = scmp.eq.s32.totalorder %s16, 0
      %p146 = por %p144, %p145
      %p147 = scmp.ne.s32.totalorder %s136, %s139
      %p148 = scmp.eq.s32.totalorder %s21, 1
      %p149 = por %p147, %p148
      %p150 = scmp.ne.s32.totalorder %s139, %s140
      %p151 = scmp.eq.s32.totalorder %s21, 0
      %p152 = por %p150, %p151
      %p153 = scmp.ne.s32.totalorder %s139, %s140
      %p154 = scmp.eq.s32.totalorder %s22, 1
      %p155 = por %p153, %p154
      %p157 = scmp.ne.s32.totalorder %s140, %s156
      %p158 = scmp.eq.s32.totalorder %s22, 0
      %p159 = por %p157, %p158
      %p160 = scmp.le.s32.totalorder 1, %s16
      %p161 = scmp.lt.s32.totalorder %s16, 3
      %p162 = pnand %p160, %p161
      %p163 = pneg %p162
      // Predicated region
      $region9: #{tpu_custom_call.1} parent=5 // pred_check
        _
      $region10: #{tpu_custom_call.1} parent=5 // pred_check_branch
        %165 = sbr.rel (%p162) target = $region12
      $region11: #{tpu_custom_call.1} parent=5 // pred_region
        %s166 = ssub.s32 %s16, 1
        // Predicated region
        $region13: #{tpu_custom_call.1} parent=11 // pred_check
          %p167 = pneg %p63
        $region14: #{tpu_custom_call.1} parent=11 // pred_check_branch
          %169 = sbr.rel (%p167) target = $region16
        $region15: #{tpu_custom_call.1} parent=11 // pred_region
          _
        $region16: #{tpu_custom_call.1} parent=11 // pred_fallthru
          _
        // Predicated region
        $region17: #{tpu_custom_call.1} parent=11 // pred_check
          %p170 = pneg %p84
        $region18: #{tpu_custom_call.1} parent=11 // pred_check_branch
          %172 = sbr.rel (%p170) target = $region20
        $region19: #{tpu_custom_call.1} parent=11 // pred_region
          _
        $region20: #{tpu_custom_call.1} parent=11 // pred_fallthru
          _
        // Predicated region
        $region21: #{tpu_custom_call.1} parent=11 // pred_check
          %p173 = pneg %p105
        $region22: #{tpu_custom_call.1} parent=11 // pred_check_branch
          %175 = sbr.rel (%p173) target = $region24
        $region23: #{tpu_custom_call.1} parent=11 // pred_region
          _
        $region24: #{tpu_custom_call.1} parent=11 // pred_fallthru
          _
        // Predicated region
        $region25: #{tpu_custom_call.1} parent=11 // pred_check
          %p176 = pneg %p126
        $region26: #{tpu_custom_call.1} parent=11 // pred_check_branch
          %178 = sbr.rel (%p176) target = $region28
        $region27: #{tpu_custom_call.1} parent=11 // pred_region
          _
        $region28: #{tpu_custom_call.1} parent=11 // pred_fallthru
          _
      $region12: #{tpu_custom_call.1} parent=5 // pred_fallthru
        _
      %p179 = scmp.lt.s32.totalorder %s16, 2
      // Predicated region
      $region29: #{tpu_custom_call.1} parent=5 // pred_check
        %p180 = pneg %p179
      $region30: #{tpu_custom_call.1} parent=5 // pred_check_branch
        %182 = sbr.rel (%p180) target = $region32
      $region31: #{tpu_custom_call.1} parent=5 // pred_region
        // Predicated region
        $region33: #{tpu_custom_call.1} parent=31 // pred_check
          %p183 = pneg %p36
        $region34: #{tpu_custom_call.1} parent=31 // pred_check_branch
          %185 = sbr.rel (%p183) target = $region36
        $region35: #{tpu_custom_call.1} parent=31 // pred_region
          %s186 = smul.u32 16, %s16
          %p187 = scmp.lt.s32.totalorder %s186, 31
          %s188 = scalar_select %p187, %s186, 31
          %s189 = smul.addr %s188, 8
          %s190 = scalar_lea.vmem %s0, %s189
          %s191 = smul.u32 16, %s16
        $region36: #{tpu_custom_call.1} parent=31 // pred_fallthru
          _
      $region32: #{tpu_custom_call.1} parent=5 // pred_fallthru
        _
      %p192 = scmp.le.s32.totalorder 1, %s16
      %p193 = scmp.lt.s32.totalorder %s16, 3
      %p194 = pnand %p192, %p193
      %p195 = pneg %p194
      // Predicated region
      $region37: #{tpu_custom_call.1} parent=5 // pred_check
        _
      $region38: #{tpu_custom_call.1} parent=5 // pred_check_branch
        %197 = sbr.rel (%p194) target = $region40
      $region39: #{tpu_custom_call.1} parent=5 // pred_region
        %s198 = ssub.s32 %s16, 1
        %s199 = smul.u32 16, %s21
        %p200 = scmp.lt.s32.totalorder %s199, 31
        %s201 = scalar_select %p200, %s199, 31
        %s202 = smul.addr %s201, 8
        %s203 = scalar_lea.vmem %s0, %s202
        %p204 = pneg %p42
        %p205 = pneg %p39
        %p206 = pneg %p63
        %p207 = pneg %p60
        %p208 = pneg %p84
        %p209 = pneg %p81
        %p210 = pneg %p105
        %p211 = pneg %p102
        %p212 = pneg %p126
        %p213 = pneg %p123
        %p214 = pneg %p152
        %p215 = pneg %p149
        %s216 = sand.u32 %s139, 1
        %s217 = scalar_lea.sflag [#allocation4], %s216
        %s218 = sand.u32 %s139, 1
        %s219 = scalar_lea.vmem [#allocation3], %s218
        %s220 = smul.u32 16, %s21
        %p221 = scmp.lt.s32.totalorder %s220, 31
        %s222 = scalar_select %p221, %s220, 31
        %s223 = smul.addr %s222, 8
        %s224 = scalar_lea.vmem %s0, %s223
        %s225 = smul.u32 16, %s21
        %v226 = vld [vmem:[%s224] sm:$0xff]
        %v227 = vld [vmem:[%s224 + $0x8] sm:$0xff]
        %v228 = vld [vmem:[%s224 + $0x10] sm:$0xff]
        %v229 = vld [vmem:[%s224 + $0x18] sm:$0xff]
        %v230 = vld [vmem:[%s224 + $0x20] sm:$0xff]
        %v231 = vld [vmem:[%s224 + $0x28] sm:$0xff]
        %v232 = vld [vmem:[%s224 + $0x30] sm:$0xff]
        %v233 = vld [vmem:[%s224 + $0x38] sm:$0xff]
        %v234 = vld [vmem:[%s224 + $0x40] sm:$0xff]
        %v235 = vld [vmem:[%s224 + $0x48] sm:$0xff]
        %v236 = vld [vmem:[%s224 + $0x50] sm:$0xff]
        %v237 = vld [vmem:[%s224 + $0x58] sm:$0xff]
        %v238 = vld [vmem:[%s224 + $0x60] sm:$0xff]
        %v239 = vld [vmem:[%s224 + $0x68] sm:$0xff]
        %v240 = vld [vmem:[%s224 + $0x70] sm:$0xff]
        %v241 = vld [vmem:[%s224 + $0x78] sm:$0xff]
        %v242 = vld [vmem:[%s1] sm:$0xff]
        %v243 = vld [vmem:[%s2] sm:$0xff]
        %245 = vset.pattern.permute.xlu0 0
        %246 = vperm.xlu0 %245, %v243
        %v247 = vpop.permute.xlu0 %246
        %vm249 = vcmask 261120
        %v251 = vsel %vm249, %v242, 0
        %v254 = vsel %vm249, %v226, 0
        %v257 = vsel %vm249, %v227, 0
        %v260 = vsel %vm249, %v228, 0
        %v263 = vsel %vm249, %v229, 0
        %v266 = vsel %vm249, %v230, 0
        %v269 = vsel %vm249, %v231, 0
        %v272 = vsel %vm249, %v232, 0
        %v275 = vsel %vm249, %v233, 0
        %v278 = vsel %vm249, %v234, 0
        %v281 = vsel %vm249, %v235, 0
        %v284 = vsel %vm249, %v236, 0
        %v287 = vsel %vm249, %v237, 0
        %v290 = vsel %vm249, %v238, 0
        %v293 = vsel %vm249, %v239, 0
        %v296 = vsel %vm249, %v240, 0
        %v299 = vsel %vm249, %v241, 0
        %301 = vmatprep.subr.mxu0 0.0
        %302 = vmatpush1.xpose.msra.mxu0 %v299
        %303 = vmatprep.subr.mxu0 0.0
        %304 = vmatpush1.xpose.msra.mxu0 %v296
        %305 = vmatprep.subr.mxu0 0.0
        %306 = vmatpush1.xpose.msra.mxu0 %v293
        %307 = vmatprep.subr.mxu0 0.0
        %308 = vmatpush1.xpose.msra.mxu0 %v290
        %309 = vmatprep.subr.mxu0 0.0
        %310 = vmatpush1.xpose.msra.mxu0 %v287
        %311 = vmatprep.subr.mxu0 0.0
        %312 = vmatpush1.xpose.msra.mxu0 %v284
        %313 = vmatprep.subr.mxu0 0.0
        %314 = vmatpush1.xpose.msra.mxu0 %v281
        %315 = vmatprep.subr.mxu0 0.0
        %316 = vmatpush1.xpose.msra.mxu0 %v278
        %317 = vmatprep.subr.mxu0 0.0
        %318 = vmatpush1.xpose.msra.mxu0 %v275
        %319 = vmatprep.subr.mxu0 0.0
        %320 = vmatpush1.xpose.msra.mxu0 %v272
        %321 = vmatprep.subr.mxu0 0.0
        %322 = vmatpush1.xpose.msra.mxu0 %v269
        %323 = vmatprep.subr.mxu0 0.0
        %324 = vmatpush1.xpose.msra.mxu0 %v266
        %325 = vmatprep.subr.mxu0 0.0
        %326 = vmatpush1.xpose.msra.mxu0 %v263
        %327 = vmatprep.subr.mxu0 0.0
        %328 = vmatpush1.xpose.msra.mxu0 %v260
        %329 = vmatprep.subr.mxu0 0.0
        %330 = vmatpush1.xpose.msra.mxu0 %v257
        %331 = vmatprep.subr.mxu0 0.0
        %332 = vmatpush1.xpose.msra.mxu0 %v254
        %333 = vmatprep.subr.mxu0 0.0
        %334 = vmatpush2.xpose.msra.mxu0 0.0
        %335 = vmatprep.subr.mxu0 0.0
        %336 = vmatpush2.xpose.msra.mxu0 0.0
        %337 = vmatprep.subr.mxu0 0.0
        %338 = vmatpush2.xpose.msra.mxu0 0.0
        %339 = vmatprep.subr.mxu0 0.0
        %340 = vmatpush2.xpose.msra.mxu0 0.0
        %341 = vmatprep.subr.mxu0 0.0
        %342 = vmatpush2.xpose.msra.mxu0 0.0
        %343 = vmatprep.subr.mxu0 0.0
        %344 = vmatpush2.xpose.msra.mxu0 0.0
        %345 = vmatprep.subr.mxu0 0.0
        %346 = vmatpush2.xpose.msra.mxu0 0.0
        %347 = vmatprep.subr.mxu0 0.0
        %348 = vmatpush2.xpose.msra.mxu0 0.0
        %349 = vmatprep.subr.mxu0 0.0
        %350 = vmatpush2.xpose.msra.mxu0 0.0
        %351 = vmatprep.subr.mxu0 0.0
        %352 = vmatpush2.xpose.msra.mxu0 0.0
        %353 = vmatprep.subr.mxu0 0.0
        %354 = vmatpush2.xpose.msra.mxu0 0.0
        %355 = vmatprep.subr.mxu0 0.0
        %356 = vmatpush2.xpose.msra.mxu0 0.0
        %357 = vmatprep.subr.mxu0 0.0
        %358 = vmatpush2.xpose.msra.mxu0 0.0
        %359 = vmatprep.subr.mxu0 0.0
        %360 = vmatpush2.xpose.msra.mxu0 0.0
        %361 = vmatprep.subr.mxu0 0.0
        %362 = vmatpush2.xpose.msra.mxu0 0.0
        %363 = vmatprep.subr.mxu0 0.0
        %364 = vmatpush2.xpose.msra.mxu0 0.0
        %365 = vmatprep.mubr.f32.mxu0 0.0
        %366 = vmatmul.mubr.f32.gmra.mxu0 %v251
        %v367 = vpop.f32.mrf.mxu0
        %v368 = vadd.f32 %v247, %v367
        %v369 = vpop.f32.mrf.mxu0
        %370 = vdwg.mxu0
        %v371 = vmax.f32 %v368, 0.0
        %v372 = vld [vmem:[%s3] sm:$0xff]
        %374 = vset.pattern.permute.xlu0 0
        %375 = vperm.xlu0 %374, %v372
        %v376 = vpop.permute.xlu0 %375
        %v378 = vmul.f32 %v371, %v376
        %v379 = vrot.slane %v378, 4
        %v380 = vadd.f32 %v378, %v379
        %v381 = vrot.slane %v380, 2
        %v382 = vadd.f32 %v380, %v381
        %v383 = vrot.slane %v382, 1
        %v384 = vadd.f32 %v382, %v383
        %v385 = vld [vmem:[#allocation2] sm:$0x1]
        %387 = vset.pattern.permute.xlu0 0
        %388 = vperm.xlu0 %387, %v385
        %v389 = vpop.permute.xlu0 %388
        %v391 = vlaneseq
        %v392 = vshrl.u32 %v391, 7
        %v393 = vsub.s32 0, %v392
        %v394 = vrot.slane %v389, %v393
        %v395 = vadd.f32 %v384, %v394
        %396 = vst [vmem:[%s219] sm:$0x1] %v395
        %s397 = sand.u32 %s139, 1
        %s398 = scalar_lea.sflag [#allocation4], %s397
        %s399 = sand.u32 %s139, 1
        %s400 = scalar_lea.vmem [#allocation3], %s399
        // Predicated region
        $region41: #{tpu_custom_call.1} parent=39 // pred_check
          %p401 = pneg %p149
        $region42: #{tpu_custom_call.1} parent=39 // pred_check_branch
          %403 = sbr.rel (%p401) target = $region44
        $region43: #{tpu_custom_call.1} parent=39 // pred_region
          %s405 = ssub.s32 16, 16
          %406 = vsyncadd %s398, %s405
          %s407 = smul.addr %s21, 16
          %s408 = scalar_lea.hbm %s5, %s407
          %s410 = sshll.u32 %s400, 4
          %s411 = int_to_ptr.vmem [resolvable:$true] %s410
          %413 = dma.vmem_to_hbm [thread:$0]  %s411, 16, %s408, %s398
        $region44: #{tpu_custom_call.1} parent=39 // pred_fallthru
          _
      $region40: #{tpu_custom_call.1} parent=5 // pred_fallthru
        _
      %p414 = scmp.le.s32.totalorder 2, %s16
      // Predicated region
      $region45: #{tpu_custom_call.1} parent=5 // pred_check
        %p415 = pneg %p414
      $region46: #{tpu_custom_call.1} parent=5 // pred_check_branch
        %417 = sbr.rel (%p415) target = $region48
      $region47: #{tpu_custom_call.1} parent=5 // pred_region
        %s418 = ssub.s32 %s16, 2
        // Predicated region
        $region49: #{tpu_custom_call.1} parent=47 // pred_check
          %p419 = pneg %p155
        $region50: #{tpu_custom_call.1} parent=47 // pred_check_branch
          %421 = sbr.rel (%p419) target = $region52
        $region51: #{tpu_custom_call.1} parent=47 // pred_region
          %s422 = sand.u32 %s140, 1
          %s423 = scalar_lea.sflag [#allocation4], %s422
          %s424 = sand.u32 %s140, 1
          %s425 = scalar_lea.vmem [#allocation3], %s424
          %426 = dma.done %s423, 16
        $region52: #{tpu_custom_call.1} parent=47 // pred_fallthru
          _
      $region48: #{tpu_custom_call.1} parent=5 // pred_fallthru
        _
    $region6: #{tpu_custom_call.1} parent=1 // loop_footer
      %s20 = sadd.s32 1, %s16
    $region7: #{tpu_custom_call.1} parent=1 // loop_footer_branch
      %15 = sbr.rel target = $region3
    $region8: #{tpu_custom_call.1} parent=1 // loop_exit
      _
    %427 = vsyncpa [#allocation4], 1
    %s428 = scalar_lea.sflag [#allocation4], 1
    %429 = vsyncpa %s428, 1

</llo_original>
